<compile_context>
chip_gen: v7x
topology: tpu7x:2x2x1
jax: 0.10.0
libtpu: 0.0.40
codegen_flags: <defaults>
</compile_context>

<pallas_src>
import jax
import jax.numpy as jnp
from jax.experimental import pallas as pl
from jax.experimental.pallas import tpu as pltpu


_MIN_GRID_STEPS = 4   # >= 2 steps per TensorCore on v7x's 2-TC megacore


def _budget():
    """Return (target_block_bytes, vmem_limit_bytes), generation aware."""
    target, limit = 4 << 20, 32 << 20            # conservative: safe on v7x (64 MiB / TC)
    try:
        info = pltpu.get_tpu_info()
        vmem = getattr(info, "vmem_capacity_bytes", None)
        if vmem is not None and vmem >= 96 * 1024 * 1024:   # v5e / v6e: 128 MiB per TC
            target, limit = 8 << 20, 64 << 20
    except Exception:
        pass
    return target, limit


def _swish_kernel(x_ref, hb_ref, o_ref):
    # x_ref:  (TR, TL) slab in VMEM.
    # hb_ref: (1, TL)  half-beta row (sublane broadcast)   -- per-feature beta, or
    #         (TR, 1)  half-beta col (lane broadcast, XLU) -- per-channel beta (NCHW).
    # y = x * sigmoid(beta*x) = 0.5 * x * (1 + tanh(0.5*beta*x)): one EUP tanh,
    # no divide -> VALU slot stays light even at full HBM rate on v7x.
    x = x_ref[...].astype(jnp.float32)
    hb = hb_ref[...].astype(jnp.float32)
    t = jnp.tanh(hb * x)
    o_ref[...] = (0.5 * x * (1.0 + t)).astype(o_ref.dtype)


def _launch(x2d, hb2d, *, beta_per_row):
    """x2d: (R, L).  hb2d: (R, 1) half-beta if beta_per_row else (1, L) half-beta (f32)."""
    R, L = x2d.shape
    itemsize = jnp.dtype(x2d.dtype).itemsize
    target_bytes, vmem_limit = _budget()

    # Lane tiling only when even an 8-row slab would exceed the block budget
    # (very wide rows).  tile_l is a multiple of 128 -> lane-dense, no VMEM OOM.
    tile_l = L
    if 8 * L * itemsize > target_bytes:
        tile_l = max(128, (target_bytes // (8 * itemsize)) // 128 * 128)
        tile_l = min(tile_l, L)

    # Row tiling: purely bytes-targeted, no artificial row cap, always a
    # multiple of 8 when tiled (Pallas masks the partial final block).
    if R <= 8:
        tile_r = R
    else:
        tile_r = (target_bytes // max(1, tile_l * itemsize)) // 8 * 8
        tile_r = max(8, min(tile_r, (R // 8) * 8))

    # Megacore guard: enough grid steps to feed both v7x TensorCores
    # (no effect on single-TC v5e / v6e).
    while (pl.cdiv(R, tile_r) * pl.cdiv(L, tile_l) < _MIN_GRID_STEPS
           and tile_r >= 16):
        tile_r = max(8, ((tile_r // 2) // 8) * 8)

    grid = (pl.cdiv(R, tile_r), pl.cdiv(L, tile_l))

    x_spec = pl.BlockSpec((tile_r, tile_l), lambda i, j: (i, j))
    out_spec = pl.BlockSpec((tile_r, tile_l), lambda i, j: (i, j))
    if beta_per_row:
        # Tiny (tile_r, 1) column; rows are the OUTER grid axis so its block
        # index is constant across the inner lane steps (no re-fetch).
        hb_spec = pl.BlockSpec((tile_r, 1), lambda i, j: (i, 0))
    else:
        hb_spec = pl.BlockSpec((1, tile_l), lambda i, j: (0, j))

    return pl.pallas_call(
        _swish_kernel,
        out_shape=jax.ShapeDtypeStruct((R, L), x2d.dtype),
        grid=grid,
        in_specs=[x_spec, hb_spec],
        out_specs=out_spec,
        compiler_params=pltpu.CompilerParams(
            dimension_semantics=("parallel", "parallel"),
            vmem_limit_bytes=vmem_limit,
        ),
    )(x2d, hb2d)


def _pick_pack(R, D):
    """For D < 128, pack k logical rows per physical row (k | R) and return the
    lane width to pad to (next multiple of 128) so stores are never masked
    partial vst.msk.  For D >= 128 leave the layout alone."""
    if D >= 128:
        return 1, D
    k_cap = max(1, min(R, 1024 // max(1, D)))
    for k in range(k_cap, 0, -1):
        if R % k == 0 and (k * D) % 128 == 0:
            return k, k * D
    best = 1
    for k in range(k_cap, 0, -1):
        if R % k == 0:
            best = k
            break
    w = best * D
    return best, ((w + 127) // 128) * 128


def swish(x, beta):
    """Swish forward matching the PyTorch module.

    x: (B, D)        -> y = x * sigmoid(beta[None, :] * x)
    x: (N, C, H, W)  -> y = x * sigmoid(beta[None, :, None, None] * x)
    beta: (dim,) learnable parameter, or (1,) scalar buffer when dim <= 0.
    """
    half_beta = 0.5 * jnp.asarray(beta, dtype=jnp.float32).reshape(-1)

    if x.ndim == 2:
        R, D = x.shape
        hb_d = (jnp.broadcast_to(half_beta, (D,))
                if half_beta.shape[0] == 1 else half_beta)
        k, pad_to = _pick_pack(R, D)
        w = k * D
        x2d = x.reshape(R // k, w)
        hb_row = jnp.tile(hb_d, k).reshape(1, w)
        if pad_to != w:
            x2d = jnp.pad(x2d, ((0, 0), (0, pad_to - w)))
            hb_row = jnp.pad(hb_row, ((0, 0), (0, pad_to - w)))
        y = _launch(x2d, hb_row, beta_per_row=False)
        if pad_to != w:
            y = y[:, :w]
        return y.reshape(R, D)

    elif x.ndim == 4:
        N, C, H, W = x.shape
        hw = H * W
        hb_c = (jnp.broadcast_to(half_beta, (C,))
                if half_beta.shape[0] == 1 else half_beta)
        if hw % 128 == 0:
            # Aligned spatial dims: (N*C, H*W) keeps sublanes dense even for a
            # tiny batch N; beta becomes a per-row (= per-channel) column.
            x2d = x.reshape(N * C, hw)
            hb_col = jnp.tile(hb_c, N).reshape(N * C, 1)
            y = _launch(x2d, hb_col, beta_per_row=True)
            return y.reshape(N, C, H, W)
        else:
            # Misaligned spatial dims (e.g. 7x7): flatten channels into the lane
            # axis (lane-dense stores); beta repeats per spatial position.
            L = C * hw
            x2d = x.reshape(N, L)
            hb_row = jnp.repeat(hb_c, hw).reshape(1, L)
            pad_to = ((L + 127) // 128) * 128 if L < 4096 else L   # pad only when cheap
            if pad_to != L:
                x2d = jnp.pad(x2d, ((0, 0), (0, pad_to - L)))
                hb_row = jnp.pad(hb_row, ((0, 0), (0, pad_to - L)))
            y = _launch(x2d, hb_row, beta_per_row=False)
            if pad_to != L:
                y = y[:, :L]
            return y.reshape(N, C, H, W)

    else:
        raise ValueError(f"Swish expects 2D or 4D input, got ndim={x.ndim}")


def _reference(x, beta):
    beta = jnp.asarray(beta, jnp.float32)
    if x.ndim == 2:
        return x * jax.nn.sigmoid(beta[None, :] * x)
    return x * jax.nn.sigmoid(beta[None, :, None, None] * x)


if __name__ == "__main__":
    key = jax.random.PRNGKey(0)
    k1, k2, k3, k4 = jax.random.split(key, 4)

    # --- 4D, aligned H*W: Swish(dim=4) on NCHW input (2, 4, 16, 16) ---
    beta_c = jnp.ones((4,), dtype=jnp.float32) + 0.1 * jnp.arange(4, dtype=jnp.float32)
    x4 = jax.random.normal(k1, (2, 4, 16, 16), dtype=jnp.float32)
    y4 = jax.block_until_ready(swish(x4, beta_c))
    assert jnp.allclose(y4, _reference(x4, beta_c), atol=1e-5, rtol=1e-5)

    # --- 4D, misaligned H*W (7x7): exercises the flattened-lane + pad path ---
    beta_c3 = jnp.ones((3,), dtype=jnp.float32) + 0.05 * jnp.arange(3, dtype=jnp.float32)
    x4b = jax.random.normal(k2, (2, 3, 7, 7), dtype=jnp.float32)
    y4b = jax.block_until_ready(swish(x4b, beta_c3))
    assert jnp.allclose(y4b, _reference(x4b, beta_c3), atol=1e-5, rtol=1e-5)

    # --- 2D: Swish(dim=32) on input (2, 32): exercises lane-pack + pad path ---
    beta_h = jnp.ones((32,), dtype=jnp.float32) + 0.01 * jnp.arange(32, dtype=jnp.float32)
    x2 = jax.random.normal(k3, (2, 32), dtype=jnp.float32)
    y2 = jax.block_until_ready(swish(x2, beta_h))
    assert jnp.allclose(y2, _reference(x2, beta_h), atol=1e-5, rtol=1e-5)

    # --- scalar-beta case (dim <= 0): beta is a single 1.0 buffer ---
    beta_s = jnp.ones((1,), dtype=jnp.float32)
    x4c = jax.random.normal(k4, (2, 4, 16, 16), dtype=jnp.float32)
    y4c = jax.block_until_ready(swish(x4c, beta_s))
    assert jnp.allclose(y4c, _reference(x4c, beta_s), atol=1e-5, rtol=1e-5)

    print("KERNEL_OK")
</pallas_src>

<mosaic_0001>
module attributes {stable_mosaic.version = 11 : i64} {
  func.func @_swish_kernel(%arg0: i32, %arg1: i32, %arg2: memref<8x256xf32, #tpu.memory_space<vmem>>, %arg3: memref<8x1xf32, #tpu.memory_space<vmem>>, %arg4: memref<8x256xf32, #tpu.memory_space<vmem>>) attributes {dimension_semantics = [#tpu.dimension_semantics<parallel>, #tpu.dimension_semantics<parallel>], iteration_bounds = array<i64: 1, 1>, scalar_prefetch = 0 : i64, scratch_operands = 0 : i64, tpu.core_type = #tpu.core_type<tc>, window_params = [{transform_indices = @transform_0, window_bounds = array<i64: 8, 256>}, {transform_indices = @transform_1, window_bounds = array<i64: 8, 1>}, {transform_indices = @transform_2, window_bounds = array<i64: 8, 256>}]} {
    %c0 = arith.constant 0 : index
    %c0_0 = arith.constant 0 : index
    %0 = vector.load %arg2[%c0, %c0_0] : memref<8x256xf32, #tpu.memory_space<vmem>>, vector<8x256xf32>
    %c0_1 = arith.constant 0 : index
    %c0_2 = arith.constant 0 : index
    %1 = vector.load %arg3[%c0_1, %c0_2] : memref<8x1xf32, #tpu.memory_space<vmem>>, vector<8x1xf32>
    %2 = vector.broadcast %1 : vector<8x1xf32> to vector<8x256xf32>
    %3 = arith.mulf %2, %0 : vector<8x256xf32>
    %4 = math.tanh %3 : vector<8x256xf32>
    %cst = arith.constant 5.000000e-01 : f32
    %5 = vector.broadcast %cst : f32 to vector<8x256xf32>
    %6 = arith.mulf %5, %0 : vector<8x256xf32>
    %cst_3 = arith.constant 1.000000e+00 : f32
    %7 = vector.broadcast %cst_3 : f32 to vector<8x256xf32>
    %8 = arith.addf %7, %4 : vector<8x256xf32>
    %9 = arith.mulf %6, %8 : vector<8x256xf32>
    %c0_4 = arith.constant 0 : index
    %c0_5 = arith.constant 0 : index
    %10 = vector.load %arg4[%c0_4, %c0_5] : memref<8x256xf32, #tpu.memory_space<vmem>>, vector<8x256xf32>
    tpu.vector_store %arg4[%c0_4, %c0_5], %9 {strides = array<i32>} : memref<8x256xf32, #tpu.memory_space<vmem>>, vector<8x256xf32>,
    return
  }
  func.func @transform_0(%arg0: i32, %arg1: i32) -> (i32, i32) {
    %c0_i32 = arith.constant 0 : i32
    return %arg0, %arg1 : i32, i32
  }
  func.func @transform_1(%arg0: i32, %arg1: i32) -> (i32, i32) {
    %c0_i32 = arith.constant 0 : i32
    %c0_i32_0 = arith.constant 0 : i32
    return %arg0, %c0_i32 : i32, i32
  }
  func.func @transform_2(%arg0: i32, %arg1: i32) -> (i32, i32) {
    %c0_i32 = arith.constant 0 : i32
    return %arg0, %arg1 : i32, i32
  }
}

</mosaic_0001>

<llo_original>
// kernel: tpu_custom_call.1
$region0: #{tpu_custom_call.1}
  #allocation0 [shape = 'u32[]', space=smem, size = 0x4, offset = 0x4, fixed_abs, tag = 'smem constant byte address 0x4 - core index']
  #allocation1 [shape = 'u32[144,128]{1,0:T(1,128)}', space=vmem, size = 0x12000, scoped, tag = 'internal scratch']
  %s0 = inlined_call_operand.hbm [shape: f32[8,256], index: 0, kind: input, shape index: {}]
  %s1 = inlined_call_operand.vmem [shape: f32[8,1], index: 1, kind: input, shape index: {}]
  %s2 = inlined_call_operand.hbm [shape: f32[8,256], index: 2, kind: output, shape index: {}]
  %s3 = sld [smem:[#allocation0]]
  $region22: #{tpu_custom_call.1} parent=0
    _
  %s5 = ssub.s32 1, %s3
  %s6 = scalar_select 0, %s5, %s3
  $region1: #{tpu_custom_call.1} parent=0
    #allocation2 [shape = 'u8[8192]{0}', space=vmem, size = 0x2000, scoped, tag = 'input window, operand 0, single buffered']
    #allocation3 [shape = 's32[1]{0}', space=sflag, size = 0x4, scoped, tag = 'scoped memory for tpu_custom_call.1']
    #allocation4 [shape = 's32[1]{0}', space=sflag, size = 0x4, scoped, tag = 'scoped memory for tpu_custom_call.1']
    #allocation5 [shape = 'u8[8192]{0}', space=vmem, size = 0x2000, scoped, tag = 'output window, operand 0, single buffered']
    %7 = vsyncpa [#allocation3], 0
    %8 = vsyncpa [#allocation4], 0
    // Predicated region
    $region2: #{tpu_custom_call.1} parent=1 // pred_check
      _
    $region3: #{tpu_custom_call.1} parent=1 // pred_check_branch
      %10 = sbr.rel (0) target = $region5
    $region4: #{tpu_custom_call.1} parent=1 // pred_region
      %s12 = ssub.s32 256, 256
      %13 = vsyncadd [#allocation3], %s12
      %s15 = sshll.u32 [#allocation2], 4
      %s16 = int_to_ptr.vmem [resolvable:$true] %s15
      %18 = dma.hbm_to_vmem [thread:$0]  %s0, 256, %s16, [#allocation3]
    $region5: #{tpu_custom_call.1} parent=1 // pred_fallthru
      _
    // Predicated region
    $region6: #{tpu_custom_call.1} parent=1 // pred_check
      _
    $region7: #{tpu_custom_call.1} parent=1 // pred_check_branch
      %20 = sbr.rel (0) target = $region9
    $region8: #{tpu_custom_call.1} parent=1 // pred_region
      _
    $region9: #{tpu_custom_call.1} parent=1 // pred_fallthru
      _
    // Predicated region
    $region10: #{tpu_custom_call.1} parent=1 // pred_check
      _
    $region11: #{tpu_custom_call.1} parent=1 // pred_check_branch
      %22 = sbr.rel (0) target = $region13
    $region12: #{tpu_custom_call.1} parent=1 // pred_region
      %23 = dma.done [#allocation3], 256
    $region13: #{tpu_custom_call.1} parent=1 // pred_fallthru
      _
    %v24 = vld [vmem:[#allocation2] sm:$0xff]
    %v25 = vld [vmem:[#allocation2 + $0x8] sm:$0xff]
    %v26 = vld [vmem:[%s1] sm:$0xff]
    %28 = vset.pattern.permute.xlu0 0
    %29 = vperm.xlu0 %28, %v26
    %v30 = vpop.permute.xlu0 %29
    %v32 = vmul.f32 %v30, %v24
    %v33 = vmul.f32 %v30, %v25
    %v34 = vtanh.pop %v32
    %v35 = vtanh.pop %v33
    %v36 = vmul.f32 %v24, 0.5
    %v37 = vmul.f32 %v25, 0.5
    %v38 = vadd.f32 %v34, 1.0
    %v39 = vadd.f32 %v35, 1.0
    %v40 = vmul.f32 %v36, %v38
    %v41 = vmul.f32 %v37, %v39
    %42 = vst [vmem:[#allocation5] sm:$0xff] %v40
    %43 = vst [vmem:[#allocation5 + $0x8] sm:$0xff] %v41
    // Predicated region
    $region14: #{tpu_custom_call.1} parent=1 // pred_check
      _
    $region15: #{tpu_custom_call.1} parent=1 // pred_check_branch
      %45 = sbr.rel (0) target = $region17
    $region16: #{tpu_custom_call.1} parent=1 // pred_region
      %s47 = ssub.s32 256, 256
      %48 = vsyncadd [#allocation4], %s47
      %s50 = sshll.u32 [#allocation5], 4
      %s51 = int_to_ptr.vmem [resolvable:$true] %s50
      %53 = dma.vmem_to_hbm [thread:$0]  %s51, 256, %s2, [#allocation4]
    $region17: #{tpu_custom_call.1} parent=1 // pred_fallthru
      _
    // Predicated region
    $region18: #{tpu_custom_call.1} parent=1 // pred_check
      _
    $region19: #{tpu_custom_call.1} parent=1 // pred_check_branch
      %55 = sbr.rel (0) target = $region21
    $region20: #{tpu_custom_call.1} parent=1 // pred_region
      %56 = dma.done [#allocation4], 256
    $region21: #{tpu_custom_call.1} parent=1 // pred_fallthru
      _
    %57 = vsyncpa [#allocation3], 1
    %58 = vsyncpa [#allocation4], 1

</llo_original>
